<compile_context>
chip_gen: v6e
topology: v6e:2x2x1
jax: 0.10.0
libtpu: 0.0.40
codegen_flags: <defaults>
</compile_context>

<pallas_src>
import jax
import jax.numpy as jnp
from jax import lax
from jax.experimental import pallas as pl
from jax.experimental.pallas import tpu as pltpu


_LQ_CHUNK = 256  # flash-style chunk along the query axis for the score max


def _build_kernel(Lq, Lc, D, lqt):
    nq_full = Lq // lqt
    lq_rem = Lq - nq_full * lqt

    def kernel(q_ref, c_ref, o_ref):
        # q_ref: (bb, Lq, D), c_ref: (bb, Lc, D), o_ref: (bb, D)
        bb = q_ref.shape[0]
        c = c_ref[...]                                        # (bb, Lc, D)

        def chunk_max(q_tile):
            # S^T[b, lq, lc] = sum_d q[b, lq, d] * c[b, lc, d]
            # A.B^T with contraction on the last (lane) dim of both operands —
            # the MXU-native form; no explicit transpose of the context tile.
            s = lax.dot_general(
                q_tile, c,
                dimension_numbers=(((2,), (2,)), ((0,), (0,))),
                preferred_element_type=jnp.float32)           # (bb, lq_t, Lc)
            return jnp.max(s, axis=1)                         # (bb, Lc)

        # Running max over the query dim == torch.max(S, 2)[0]; the full
        # (bb, Lq, Lc) f32 score matrix is never materialized when Lq > lqt.
        if Lq <= lqt:
            m = chunk_max(q_ref[...])
        else:
            def body(i, m_carry):
                start = pl.multiple_of(i * lqt, lqt)
                q_tile = q_ref[:, pl.ds(start, lqt), :]
                return jnp.maximum(m_carry, chunk_max(q_tile))

            m = lax.fori_loop(
                0, nq_full, body,
                jnp.full((bb, Lc), -jnp.inf, dtype=jnp.float32))
            if lq_rem:
                m = jnp.maximum(m, chunk_max(q_ref[:, nq_full * lqt:, :]))

        # Numerically stable softmax over the context dim Lc.
        m_max = jnp.max(m, axis=-1, keepdims=True)            # (bb, 1)
        e = jnp.exp(m - m_max)                                 # (bb, Lc)
        denom = jnp.sum(e, axis=-1, keepdims=True)             # (bb, 1)
        attn = e * pl.reciprocal(denom, approx=True)           # (bb, Lc)  (EUP)

        # context_vec = attn @ context on the MXU: (bb,1,Lc) x (bb,Lc,D).
        # The MXU has huge slack here and this avoids a (bb, Lc, D) f32
        # broadcast temporary (the previous VPU formulation).
        attn3 = attn[:, None, :].astype(c.dtype)               # (bb, 1, Lc)
        out3 = lax.dot_general(
            attn3, c,
            dimension_numbers=(((2,), (1,)), ((0,), (0,))),
            preferred_element_type=jnp.float32)                # (bb, 1, D) f32
        o_ref[...] = out3[:, 0, :].astype(o_ref.dtype)

    return kernel


def _vmem_caps():
    """Return (block-sizing budget, compiler vmem limit) in bytes.

    Falls back to the smallest per-core VMEM (v7x, 64 MiB) if the hardware
    query is unavailable. Budget = 0.4 * capacity for block sizing; compiler
    limit keeps >= 16 MiB headroom for Mosaic internal scratch.
    """
    cap = 64 * 1024 * 1024
    try:
        cap = int(pltpu.get_tpu_info().vmem_capacity_bytes)
    except Exception:
        pass
    budget = int(cap * 0.4)
    vmem_limit = max(16 * 1024 * 1024,
                     min(int(cap * 0.75), cap - 16 * 1024 * 1024))
    return budget, vmem_limit


def _num_tensorcores():
    """Best-effort number of TensorCores per chip (2 on v7x, else 1)."""
    try:
        info = pltpu.get_tpu_info()
        for attr in ("num_cores", "num_tensorcores",
                     "tensorcores_per_chip", "cores_per_chip"):
            v = getattr(info, attr, None)
            if v:
                return max(1, int(v))
    except Exception:
        pass
    try:
        dev = jax.devices()[0]
        v = getattr(dev, "num_cores", None)
        if v:
            return max(1, int(v))
        if "v7" in str(getattr(dev, "device_kind", "")).lower():
            return 2
    except Exception:
        pass
    return 1


def _pick_batch_block(B, Lq, Lc, D, in_itemsize, budget, num_cores, lqt):
    # Honest per-batch-element VMEM footprint: the score matrix is Lq-chunked
    # and the weighted sum runs on the MXU, so no (Lc, D) f32 broadcast
    # temporary exists.
    per_b = (2 * (Lq + Lc) * D * in_itemsize     # double-buffered q/c inputs
             + 2 * D * in_itemsize               # double-buffered output rows
             + lqt * Lc * 4                      # f32 score chunk
             + 6 * Lc * 4                        # running max / softmax temps
             + 2 * 8 * D * 4)                    # M=1 (sublane-padded) matmul out
    bb = max(1, int(budget) // int(per_b))
    if num_cores >= 2:
        # Keep at least `num_cores` grid steps so the "parallel" batch axis
        # can be sharded across TensorCores (v7x). No-op on 1-TC v5e / v6e.
        bb = min(bb, max(1, pl.cdiv(B, num_cores)))
    if bb >= B:
        return B                                  # single dense block (full dim)
    # When the batch is split, the output block's sublane dim must be
    # 8-aligned (Mosaic block-shape rule). The last grid block may be ragged;
    # Pallas masks its out-of-range rows — no host-side padding needed.
    bb = max(8, (bb // 8) * 8)
    if bb >= B:
        return B
    return bb


def code_wise_attention(query, context):
    """query: (B, Lq, D), context: (B, Lc, D) -> (B, 1, D)."""
    B, Lq, D = query.shape
    Bc, Lc, Dc = context.shape
    assert B == Bc and D == Dc

    budget, vmem_limit = _vmem_caps()
    num_cores = _num_tensorcores()
    lqt = min(Lq, _LQ_CHUNK)
    bb = _pick_batch_block(B, Lq, Lc, D, jnp.dtype(query.dtype).itemsize,
                           budget, num_cores, lqt)
    n_blocks = pl.cdiv(B, bb)

    kernel = _build_kernel(Lq, Lc, D, lqt)

    out2d = pl.pallas_call(
        kernel,
        out_shape=jax.ShapeDtypeStruct((B, D), context.dtype),
        grid_spec=pltpu.PrefetchScalarGridSpec(
            num_scalar_prefetch=0,
            grid=(n_blocks,),
            in_specs=[
                pl.BlockSpec((bb, Lq, D), lambda i: (i, 0, 0)),
                pl.BlockSpec((bb, Lc, D), lambda i: (i, 0, 0)),
            ],
            # Lane-dense (bb sublanes x D lanes) output slab.
            out_specs=pl.BlockSpec((bb, D), lambda i: (i, 0)),
        ),
        compiler_params=pltpu.CompilerParams(
            dimension_semantics=("parallel",),
            vmem_limit_bytes=vmem_limit),
    )(query, context)

    # Restore the module's (B, 1, D) output shape.
    return out2d[:, None, :]


def code_wise_attention_ref(query, context):
    # Pure-JAX reference mirroring the PyTorch module.
    S = jnp.einsum("bld,bqd->blq", context, query)            # (B, Lc, Lq)
    attn = jax.nn.softmax(jnp.max(S, axis=2), axis=-1)        # (B, Lc)
    return jnp.einsum("bl,bld->bd", attn, context)[:, None]   # (B, 1, D)


if __name__ == "__main__":
    key = jax.random.PRNGKey(0)
    k1, k2 = jax.random.split(key)

    # Small shapes consistent with the module (batch of docs, label codes,
    # hidden = 2 * GRU hidden).
    B, Lq, Lc, D = 2, 8, 16, 32
    query = jax.random.normal(k1, (B, Lq, D), dtype=jnp.float32)
    context = jax.random.normal(k2, (B, Lc, D), dtype=jnp.float32)

    out = jax.block_until_ready(code_wise_attention(query, context))
    ref = code_wise_attention_ref(query, context)

    assert out.shape == (B, 1, D)
    # approx=True reciprocal introduces ~1e-3-level relative error in the
    # softmax normalizer; tolerance chosen accordingly.
    assert jnp.allclose(out, ref, atol=5e-3, rtol=5e-3), "mismatch vs reference"

    print("KERNEL_OK")
</pallas_src>

<mosaic_0001>
module attributes {stable_mosaic.version = 11 : i64} {
  func.func @kernel(%arg0: i32, %arg1: memref<2x8x32xf32, #tpu.memory_space<vmem>>, %arg2: memref<2x16x32xf32, #tpu.memory_space<vmem>>, %arg3: memref<2x32xf32, #tpu.memory_space<vmem>>) attributes {dimension_semantics = [#tpu.dimension_semantics<parallel>], iteration_bounds = array<i64: 1>, scalar_prefetch = 0 : i64, scratch_operands = 0 : i64, tpu.core_type = #tpu.core_type<tc>, window_params = [{transform_indices = @transform_0, window_bounds = array<i64: 2, 8, 32>}, {transform_indices = @transform_1, window_bounds = array<i64: 2, 16, 32>}, {transform_indices = @transform_2, window_bounds = array<i64: 2, 32>}]} {
    %c0 = arith.constant 0 : index
    %c0_0 = arith.constant 0 : index
    %c0_1 = arith.constant 0 : index
    %0 = vector.load %arg2[%c0, %c0_0, %c0_1] : memref<2x16x32xf32, #tpu.memory_space<vmem>>, vector<2x16x32xf32>
    %c0_2 = arith.constant 0 : index
    %c0_3 = arith.constant 0 : index
    %c0_4 = arith.constant 0 : index
    %1 = vector.load %arg1[%c0_2, %c0_3, %c0_4] : memref<2x8x32xf32, #tpu.memory_space<vmem>>, vector<2x8x32xf32>
    %cst = arith.constant dense<0.000000e+00> : vector<2x8x16xf32>
    %2 = tpu.matmul %1, %0, %cst {dimension_numbers = #tpu.dot_dimension_numbers<[2], [2], [1], [1], [0, 0, 0, 1, 1, 1], [0], [0]>} : vector<2x8x32xf32>, vector<2x16x32xf32>, vector<2x8x16xf32> -> vector<2x8x16xf32>
    %cst_5 = arith.constant dense<0xFF800000> : vector<2x16xf32>
    %3 = vector.multi_reduction <maximumf>, %2, %cst_5 [1] : vector<2x8x16xf32> to vector<2x16xf32>
    %cst_6 = arith.constant dense<0xFF800000> : vector<2xf32>
    %4 = vector.multi_reduction <maximumf>, %3, %cst_6 [1] : vector<2x16xf32> to vector<2xf32>
    %5 = vector.shape_cast %4 : vector<2xf32> to vector<2x1xf32>
    %6 = vector.broadcast %5 : vector<2x1xf32> to vector<2x16xf32>
    %7 = arith.subf %3, %6 : vector<2x16xf32>
    %8 = math.exp %7 : vector<2x16xf32>
    %cst_7 = arith.constant dense<0.000000e+00> : vector<2xf32>
    %9 = vector.multi_reduction <add>, %8, %cst_7 [1] : vector<2x16xf32> to vector<2xf32>
    %10 = vector.shape_cast %9 : vector<2xf32> to vector<2x1xf32>
    %11 = tpu.reciprocal %10 {approx = true} : vector<2x1xf32> -> vector<2x1xf32>
    %12 = vector.broadcast %11 : vector<2x1xf32> to vector<2x16xf32>
    %13 = arith.mulf %8, %12 : vector<2x16xf32>
    %14 = vector.shape_cast %13 : vector<2x16xf32> to vector<2x1x16xf32>
    %cst_8 = arith.constant dense<0.000000e+00> : vector<2x1x32xf32>
    %15 = tpu.matmul %14, %0, %cst_8 {dimension_numbers = #tpu.dot_dimension_numbers<[2], [1], [1], [2], [0, 0, 0, 1, 1, 2], [0], [0]>} : vector<2x1x16xf32>, vector<2x16x32xf32>, vector<2x1x32xf32> -> vector<2x1x32xf32>
    %16 = vector.shape_cast %15 : vector<2x1x32xf32> to vector<2x32xf32>
    %c0_9 = arith.constant 0 : index
    %c0_10 = arith.constant 0 : index
    %17 = vector.load %arg3[%c0_9, %c0_10] : memref<2x32xf32, #tpu.memory_space<vmem>>, vector<2x32xf32>
    tpu.vector_store %arg3[%c0_9, %c0_10], %16 {strides = array<i32>} : memref<2x32xf32, #tpu.memory_space<vmem>>, vector<2x32xf32>,
    return
  }
  func.func @transform_0(%arg0: i32) -> (i32, i32, i32) {
    %c0_i32 = arith.constant 0 : i32
    %c0_i32_0 = arith.constant 0 : i32
    %c0_i32_1 = arith.constant 0 : i32
    return %arg0, %c0_i32, %c0_i32_0 : i32, i32, i32
  }
  func.func @transform_1(%arg0: i32) -> (i32, i32, i32) {
    %c0_i32 = arith.constant 0 : i32
    %c0_i32_0 = arith.constant 0 : i32
    %c0_i32_1 = arith.constant 0 : i32
    return %arg0, %c0_i32, %c0_i32_0 : i32, i32, i32
  }
  func.func @transform_2(%arg0: i32) -> (i32, i32) {
    %c0_i32 = arith.constant 0 : i32
    %c0_i32_0 = arith.constant 0 : i32
    return %arg0, %c0_i32 : i32, i32
  }
}

</mosaic_0001>

<llo_original>
// kernel: tpu_custom_call.1
$region0: #{tpu_custom_call.1}
  #allocation0 [shape = 'u32[]', space=smem, size = 0x4, offset = 0x4, fixed_abs, tag = 'smem constant byte address 0x4 - core index']
  #allocation1 [shape = 'u32[144,128]{1,0:T(1,128)}', space=vmem, size = 0x12000, scoped, tag = 'internal scratch']
  %s0 = inlined_call_operand.hbm [shape: f32[2,8,32], index: 0, kind: input, shape index: {}]
  %s1 = inlined_call_operand.hbm [shape: f32[2,16,32], index: 1, kind: input, shape index: {}]
  %s2 = inlined_call_operand.hbm [shape: f32[2,32], index: 2, kind: output, shape index: {}]
  %s3 = sld [smem:[#allocation0]]
  $region26: #{tpu_custom_call.1} parent=0
    _
  %s5 = ssub.s32 1, %s3
  %s6 = scalar_select 0, %s5, %s3
  $region1: #{tpu_custom_call.1} parent=0
    #allocation2 [shape = 'u8[8192]{0}', space=vmem, size = 0x2000, scoped, tag = 'input window, operand 0, single buffered']
    #allocation3 [shape = 's32[1]{0}', space=sflag, size = 0x4, scoped, tag = 'scoped memory for tpu_custom_call.1']
    #allocation4 [shape = 's32[1]{0}', space=sflag, size = 0x4, scoped, tag = 'scoped memory for tpu_custom_call.1']
    #allocation5 [shape = 'u8[16384]{0}', space=vmem, size = 0x4000, scoped, tag = 'input window, operand 1, single buffered']
    #allocation6 [shape = 's32[1]{0}', space=sflag, size = 0x4, scoped, tag = 'scoped memory for tpu_custom_call.1']
    #allocation7 [shape = 'u8[1024]{0}', space=vmem, size = 0x400, scoped, tag = 'output window, operand 0, single buffered']
    %7 = vsyncpa [#allocation3], 0
    %8 = vsyncpa [#allocation6], 0
    %9 = vsyncpa [#allocation4], 0
    // Predicated region
    $region2: #{tpu_custom_call.1} parent=1 // pred_check
      _
    $region3: #{tpu_custom_call.1} parent=1 // pred_check_branch
      %11 = sbr.rel (0) target = $region5
    $region4: #{tpu_custom_call.1} parent=1 // pred_region
      %s13 = ssub.s32 256, 256
      %14 = vsyncadd [#allocation3], %s13
      %s15 = sshll.u32 [#allocation2], 4
      %s16 = int_to_ptr.vmem [resolvable:$true] %s15
      %21 = dma.hbm_to_vmem [thread:$0]  %s0, 256, %s16, [#allocation3], 128, 128, 8
    $region5: #{tpu_custom_call.1} parent=1 // pred_fallthru
      _
    // Predicated region
    $region6: #{tpu_custom_call.1} parent=1 // pred_check
      _
    $region7: #{tpu_custom_call.1} parent=1 // pred_check_branch
      %23 = sbr.rel (0) target = $region9
    $region8: #{tpu_custom_call.1} parent=1 // pred_region
      %s25 = ssub.s32 512, 512
      %26 = vsyncadd [#allocation6], %s25
      %s27 = sshll.u32 [#allocation5], 4
      %s28 = int_to_ptr.vmem [resolvable:$true] %s27
      %33 = dma.hbm_to_vmem [thread:$0]  %s1, 512, %s28, [#allocation6], 128, 128, 8
    $region9: #{tpu_custom_call.1} parent=1 // pred_fallthru
      _
    // Predicated region
    $region10: #{tpu_custom_call.1} parent=1 // pred_check
      _
    $region11: #{tpu_custom_call.1} parent=1 // pred_check_branch
      %35 = sbr.rel (0) target = $region13
    $region12: #{tpu_custom_call.1} parent=1 // pred_region
      %36 = dma.done [#allocation3], 256
    $region13: #{tpu_custom_call.1} parent=1 // pred_fallthru
      _
    // Predicated region
    $region14: #{tpu_custom_call.1} parent=1 // pred_check
      _
    $region15: #{tpu_custom_call.1} parent=1 // pred_check_branch
      %38 = sbr.rel (0) target = $region17
    $region16: #{tpu_custom_call.1} parent=1 // pred_region
      %39 = dma.done [#allocation6], 512
    $region17: #{tpu_custom_call.1} parent=1 // pred_fallthru
      _
    %v40 = vld [vmem:[#allocation5] sm:$0xff]
    %v41 = vld [vmem:[#allocation5 + $0x8] sm:$0xff]
    %v42 = vld [vmem:[#allocation5 + $0x10] sm:$0xff]
    %v43 = vld [vmem:[#allocation5 + $0x18] sm:$0xff]
    %v44 = vld [vmem:[#allocation2] sm:$0xff]
    %v45 = vld [vmem:[#allocation2 + $0x8] sm:$0xff]
    %vm46 = vcmask 261120
    %v48 = vsel %vm46, %v44, 0
    %v51 = vsel %vm46, %v40, 0
    %v54 = vsel %vm46, %v41, 0
    %56 = vmatprep.subr.mxu0 0.0
    %57 = vmatpush1.xpose.msra.mxu0 0.0
    %58 = vmatprep.subr.mxu0 0.0
    %59 = vmatpush1.xpose.msra.mxu0 0.0
    %60 = vmatprep.subr.mxu0 0.0
    %61 = vmatpush1.xpose.msra.mxu0 0.0
    %62 = vmatprep.subr.mxu0 0.0
    %63 = vmatpush1.xpose.msra.mxu0 0.0
    %64 = vmatprep.subr.mxu0 0.0
    %65 = vmatpush1.xpose.msra.mxu0 0.0
    %66 = vmatprep.subr.mxu0 0.0
    %67 = vmatpush1.xpose.msra.mxu0 0.0
    %68 = vmatprep.subr.mxu0 0.0
    %69 = vmatpush1.xpose.msra.mxu0 0.0
    %70 = vmatprep.subr.mxu0 0.0
    %71 = vmatpush1.xpose.msra.mxu0 0.0
    %72 = vmatprep.subr.mxu0 0.0
    %73 = vmatpush1.xpose.msra.mxu0 0.0
    %74 = vmatprep.subr.mxu0 0.0
    %75 = vmatpush1.xpose.msra.mxu0 0.0
    %76 = vmatprep.subr.mxu0 0.0
    %77 = vmatpush1.xpose.msra.mxu0 0.0
    %78 = vmatprep.subr.mxu0 0.0
    %79 = vmatpush1.xpose.msra.mxu0 0.0
    %80 = vmatprep.subr.mxu0 0.0
    %81 = vmatpush1.xpose.msra.mxu0 0.0
    %82 = vmatprep.subr.mxu0 0.0
    %83 = vmatpush1.xpose.msra.mxu0 0.0
    %84 = vmatprep.subr.mxu0 0.0
    %85 = vmatpush1.xpose.msra.mxu0 %v54
    %86 = vmatprep.subr.mxu0 0.0
    %87 = vmatpush1.xpose.msra.mxu0 %v51
    %88 = vmatprep.subr.mxu0 0.0
    %89 = vmatpush2.xpose.msra.mxu0 0.0
    %90 = vmatprep.subr.mxu0 0.0
    %91 = vmatpush2.xpose.msra.mxu0 0.0
    %92 = vmatprep.subr.mxu0 0.0
    %93 = vmatpush2.xpose.msra.mxu0 0.0
    %94 = vmatprep.subr.mxu0 0.0
    %95 = vmatpush2.xpose.msra.mxu0 0.0
    %96 = vmatprep.subr.mxu0 0.0
    %97 = vmatpush2.xpose.msra.mxu0 0.0
    %98 = vmatprep.subr.mxu0 0.0
    %99 = vmatpush2.xpose.msra.mxu0 0.0
    %100 = vmatprep.subr.mxu0 0.0
    %101 = vmatpush2.xpose.msra.mxu0 0.0
    %102 = vmatprep.subr.mxu0 0.0
    %103 = vmatpush2.xpose.msra.mxu0 0.0
    %104 = vmatprep.subr.mxu0 0.0
    %105 = vmatpush2.xpose.msra.mxu0 0.0
    %106 = vmatprep.subr.mxu0 0.0
    %107 = vmatpush2.xpose.msra.mxu0 0.0
    %108 = vmatprep.subr.mxu0 0.0
    %109 = vmatpush2.xpose.msra.mxu0 0.0
    %110 = vmatprep.subr.mxu0 0.0
    %111 = vmatpush2.xpose.msra.mxu0 0.0
    %112 = vmatprep.subr.mxu0 0.0
    %113 = vmatpush2.xpose.msra.mxu0 0.0
    %114 = vmatprep.subr.mxu0 0.0
    %115 = vmatpush2.xpose.msra.mxu0 0.0
    %116 = vmatprep.subr.mxu0 0.0
    %117 = vmatpush2.xpose.msra.mxu0 0.0
    %118 = vmatprep.subr.mxu0 0.0
    %119 = vmatpush2.xpose.msra.mxu0 0.0
    %120 = vmatprep.mubr.f32.mxu0 0.0
    %121 = vmatmul.mubr.f32.gmra.mxu0 %v48
    %v122 = vpop.f32.mrf.mxu0
    %v123 = vadd.f32 0.0, %v122
    %v124 = vpop.f32.mrf.mxu0
    %125 = vdwg.mxu0
    %v127 = vsel %vm46, %v45, 0
    %v130 = vsel %vm46, %v42, 0
    %v133 = vsel %vm46, %v43, 0
    %135 = vmatprep.subr.mxu0 0.0
    %136 = vmatpush1.xpose.msra.mxu0 0.0
    %137 = vmatprep.subr.mxu0 0.0
    %138 = vmatpush1.xpose.msra.mxu0 0.0
    %139 = vmatprep.subr.mxu0 0.0
    %140 = vmatpush1.xpose.msra.mxu0 0.0
    %141 = vmatprep.subr.mxu0 0.0
    %142 = vmatpush1.xpose.msra.mxu0 0.0
    %143 = vmatprep.subr.mxu0 0.0
    %144 = vmatpush1.xpose.msra.mxu0 0.0
    %145 = vmatprep.subr.mxu0 0.0
    %146 = vmatpush1.xpose.msra.mxu0 0.0
    %147 = vmatprep.subr.mxu0 0.0
    %148 = vmatpush1.xpose.msra.mxu0 0.0
    %149 = vmatprep.subr.mxu0 0.0
    %150 = vmatpush1.xpose.msra.mxu0 0.0
    %151 = vmatprep.subr.mxu0 0.0
    %152 = vmatpush1.xpose.msra.mxu0 0.0
    %153 = vmatprep.subr.mxu0 0.0
    %154 = vmatpush1.xpose.msra.mxu0 0.0
    %155 = vmatprep.subr.mxu0 0.0
    %156 = vmatpush1.xpose.msra.mxu0 0.0
    %157 = vmatprep.subr.mxu0 0.0
    %158 = vmatpush1.xpose.msra.mxu0 0.0
    %159 = vmatprep.subr.mxu0 0.0
    %160 = vmatpush1.xpose.msra.mxu0 0.0
    %161 = vmatprep.subr.mxu0 0.0
    %162 = vmatpush1.xpose.msra.mxu0 0.0
    %163 = vmatprep.subr.mxu0 0.0
    %164 = vmatpush1.xpose.msra.mxu0 %v133
    %165 = vmatprep.subr.mxu0 0.0
    %166 = vmatpush1.xpose.msra.mxu0 %v130
    %167 = vmatprep.subr.mxu0 0.0
    %168 = vmatpush2.xpose.msra.mxu0 0.0
    %169 = vmatprep.subr.mxu0 0.0
    %170 = vmatpush2.xpose.msra.mxu0 0.0
    %171 = vmatprep.subr.mxu0 0.0
    %172 = vmatpush2.xpose.msra.mxu0 0.0
    %173 = vmatprep.subr.mxu0 0.0
    %174 = vmatpush2.xpose.msra.mxu0 0.0
    %175 = vmatprep.subr.mxu0 0.0
    %176 = vmatpush2.xpose.msra.mxu0 0.0
    %177 = vmatprep.subr.mxu0 0.0
    %178 = vmatpush2.xpose.msra.mxu0 0.0
    %179 = vmatprep.subr.mxu0 0.0
    %180 = vmatpush2.xpose.msra.mxu0 0.0
    %181 = vmatprep.subr.mxu0 0.0
    %182 = vmatpush2.xpose.msra.mxu0 0.0
    %183 = vmatprep.subr.mxu0 0.0
    %184 = vmatpush2.xpose.msra.mxu0 0.0
    %185 = vmatprep.subr.mxu0 0.0
    %186 = vmatpush2.xpose.msra.mxu0 0.0
    %187 = vmatprep.subr.mxu0 0.0
    %188 = vmatpush2.xpose.msra.mxu0 0.0
    %189 = vmatprep.subr.mxu0 0.0
    %190 = vmatpush2.xpose.msra.mxu0 0.0
    %191 = vmatprep.subr.mxu0 0.0
    %192 = vmatpush2.xpose.msra.mxu0 0.0
    %193 = vmatprep.subr.mxu0 0.0
    %194 = vmatpush2.xpose.msra.mxu0 0.0
    %195 = vmatprep.subr.mxu0 0.0
    %196 = vmatpush2.xpose.msra.mxu0 0.0
    %197 = vmatprep.subr.mxu0 0.0
    %198 = vmatpush2.xpose.msra.mxu0 0.0
    %199 = vmatprep.mubr.f32.mxu0 0.0
    %200 = vmatmul.mubr.f32.gmra.mxu0 %v127
    %v201 = vpop.f32.mrf.mxu0
    %v202 = vadd.f32 0.0, %v201
    %v203 = vpop.f32.mrf.mxu0
    %204 = vdwg.mxu0
    %vm205 = vcmask 130048
    %v206 = vsel %vm205, %v123, -inf
    %v207 = vrot.slane %v206, 4
    %v208 = vmax.f32 %v206, %v207
    %v209 = vrot.slane %v208, 2
    %v210 = vmax.f32 %v208, %v209
    %v211 = vrot.slane %v210, 1
    %v212 = vmax.f32 %v210, %v211
    %v213 = vsel %vm205, %v202, -inf
    %v214 = vrot.slane %v213, 4
    %v215 = vmax.f32 %v213, %v214
    %v216 = vrot.slane %v215, 2
    %v217 = vmax.f32 %v215, %v216
    %v218 = vrot.slane %v217, 1
    %v219 = vmax.f32 %v217, %v218
    %vm222 = vcmask 1041409
    %v223 = vsel %vm222, %v219, %v212
    %vm225 = vcmask 123904
    %v226 = vsel %vm225, %v223, -inf
    %227 = vmax.xlane.f32.xlu0 %v226
    %v228 = vpop.xlane.xlu0 %227
    %v230 = vrot.slane %v228, 1
    %v233 = vsub.f32 %v212, %v228
    %v234 = vsub.f32 %v219, %v230
    %v235 = vmul.f32 %v233, 1.442695
    %v236 = vpow.pop %v235
    %v237 = vmul.f32 %v234, 1.442695
    %v238 = vpow.pop %v237
    %v241 = vrot.slane %v238, 7
    %v242 = vsel %vm222, %v241, %v236
    %v244 = vsel %vm225, %v242, 0.0
    %245 = vadd.xlane.f32.xlu0 %v244
    %v246 = vpop.xlane.xlu0 %245
    %v247 = vrcp.pop %v246
    %v249 = vrot.slane %v247, 1
    %v252 = vmul.f32 %v236, %v247
    %v253 = vmul.f32 %v238, %v249
    %v255 = vsel %vm205, %v252, 0
    %257 = vmatprep.subr.mxu0 0.0
    %258 = vmatpush1.msra.mxu0 0.0
    %259 = vmatprep.subr.mxu0 0.0
    %260 = vmatpush1.msra.mxu0 0.0
    %261 = vmatprep.subr.mxu0 0.0
    %262 = vmatpush1.msra.mxu0 0.0
    %263 = vmatprep.subr.mxu0 0.0
    %264 = vmatpush1.msra.mxu0 0.0
    %265 = vmatprep.subr.mxu0 0.0
    %266 = vmatpush1.msra.mxu0 0.0
    %267 = vmatprep.subr.mxu0 0.0
    %268 = vmatpush1.msra.mxu0 0.0
    %269 = vmatprep.subr.mxu0 0.0
    %270 = vmatpush1.msra.mxu0 0.0
    %271 = vmatprep.subr.mxu0 0.0
    %272 = vmatpush1.msra.mxu0 0.0
    %273 = vmatprep.subr.mxu0 0.0
    %274 = vmatpush1.msra.mxu0 0.0
    %275 = vmatprep.subr.mxu0 0.0
    %276 = vmatpush1.msra.mxu0 0.0
    %277 = vmatprep.subr.mxu0 0.0
    %278 = vmatpush1.msra.mxu0 0.0
    %279 = vmatprep.subr.mxu0 0.0
    %280 = vmatpush1.msra.mxu0 0.0
    %281 = vmatprep.subr.mxu0 0.0
    %282 = vmatpush1.msra.mxu0 0.0
    %283 = vmatprep.subr.mxu0 0.0
    %284 = vmatpush1.msra.mxu0 0.0
    %285 = vmatprep.subr.mxu0 0.0
    %286 = vmatpush1.msra.mxu0 %v41
    %287 = vmatprep.subr.mxu0 0.0
    %288 = vmatpush1.msra.mxu0 %v40
    %289 = vmatprep.subr.mxu0 0.0
    %290 = vmatpush2.msra.mxu0 0.0
    %291 = vmatprep.subr.mxu0 0.0
    %292 = vmatpush2.msra.mxu0 0.0
    %293 = vmatprep.subr.mxu0 0.0
    %294 = vmatpush2.msra.mxu0 0.0
    %295 = vmatprep.subr.mxu0 0.0
    %296 = vmatpush2.msra.mxu0 0.0
    %297 = vmatprep.subr.mxu0 0.0
    %298 = vmatpush2.msra.mxu0 0.0
    %299 = vmatprep.subr.mxu0 0.0
    %300 = vmatpush2.msra.mxu0 0.0
    %301 = vmatprep.subr.mxu0 0.0
    %302 = vmatpush2.msra.mxu0 0.0
    %303 = vmatprep.subr.mxu0 0.0
    %304 = vmatpush2.msra.mxu0 0.0
    %305 = vmatprep.subr.mxu0 0.0
    %306 = vmatpush2.msra.mxu0 0.0
    %307 = vmatprep.subr.mxu0 0.0
    %308 = vmatpush2.msra.mxu0 0.0
    %309 = vmatprep.subr.mxu0 0.0
    %310 = vmatpush2.msra.mxu0 0.0
    %311 = vmatprep.subr.mxu0 0.0
    %312 = vmatpush2.msra.mxu0 0.0
    %313 = vmatprep.subr.mxu0 0.0
    %314 = vmatpush2.msra.mxu0 0.0
    %315 = vmatprep.subr.mxu0 0.0
    %316 = vmatpush2.msra.mxu0 0.0
    %317 = vmatprep.subr.mxu0 0.0
    %318 = vmatpush2.msra.mxu0 0.0
    %319 = vmatprep.subr.mxu0 0.0
    %320 = vmatpush2.msra.mxu0 0.0
    %321 = vmatprep.mubr.f32.mxu0 0.0
    %322 = vmatmul.mubr.f32.gmra.mxu0 %v255
    %v323 = vpop.f32.mrf.mxu0
    %v324 = vadd.f32 0.0, %v323
    %v325 = vpop.f32.mrf.mxu0
    %326 = vdwg.mxu0
    %v328 = vsel %vm205, %v253, 0
    %330 = vmatprep.subr.mxu0 0.0
    %331 = vmatpush1.msra.mxu0 0.0
    %332 = vmatprep.subr.mxu0 0.0
    %333 = vmatpush1.msra.mxu0 0.0
    %334 = vmatprep.subr.mxu0 0.0
    %335 = vmatpush1.msra.mxu0 0.0
    %336 = vmatprep.subr.mxu0 0.0
    %337 = vmatpush1.msra.mxu0 0.0
    %338 = vmatprep.subr.mxu0 0.0
    %339 = vmatpush1.msra.mxu0 0.0
    %340 = vmatprep.subr.mxu0 0.0
    %341 = vmatpush1.msra.mxu0 0.0
    %342 = vmatprep.subr.mxu0 0.0
    %343 = vmatpush1.msra.mxu0 0.0
    %344 = vmatprep.subr.mxu0 0.0
    %345 = vmatpush1.msra.mxu0 0.0
    %346 = vmatprep.subr.mxu0 0.0
    %347 = vmatpush1.msra.mxu0 0.0
    %348 = vmatprep.subr.mxu0 0.0
    %349 = vmatpush1.msra.mxu0 0.0
    %350 = vmatprep.subr.mxu0 0.0
    %351 = vmatpush1.msra.mxu0 0.0
    %352 = vmatprep.subr.mxu0 0.0
    %353 = vmatpush1.msra.mxu0 0.0
    %354 = vmatprep.subr.mxu0 0.0
    %355 = vmatpush1.msra.mxu0 0.0
    %356 = vmatprep.subr.mxu0 0.0
    %357 = vmatpush1.msra.mxu0 0.0
    %358 = vmatprep.subr.mxu0 0.0
    %359 = vmatpush1.msra.mxu0 %v43
    %360 = vmatprep.subr.mxu0 0.0
    %361 = vmatpush1.msra.mxu0 %v42
    %362 = vmatprep.subr.mxu0 0.0
    %363 = vmatpush2.msra.mxu0 0.0
    %364 = vmatprep.subr.mxu0 0.0
    %365 = vmatpush2.msra.mxu0 0.0
    %366 = vmatprep.subr.mxu0 0.0
    %367 = vmatpush2.msra.mxu0 0.0
    %368 = vmatprep.subr.mxu0 0.0
    %369 = vmatpush2.msra.mxu0 0.0
    %370 = vmatprep.subr.mxu0 0.0
    %371 = vmatpush2.msra.mxu0 0.0
    %372 = vmatprep.subr.mxu0 0.0
    %373 = vmatpush2.msra.mxu0 0.0
    %374 = vmatprep.subr.mxu0 0.0
    %375 = vmatpush2.msra.mxu0 0.0
    %376 = vmatprep.subr.mxu0 0.0
    %377 = vmatpush2.msra.mxu0 0.0
    %378 = vmatprep.subr.mxu0 0.0
    %379 = vmatpush2.msra.mxu0 0.0
    %380 = vmatprep.subr.mxu0 0.0
    %381 = vmatpush2.msra.mxu0 0.0
    %382 = vmatprep.subr.mxu0 0.0
    %383 = vmatpush2.msra.mxu0 0.0
    %384 = vmatprep.subr.mxu0 0.0
    %385 = vmatpush2.msra.mxu0 0.0
    %386 = vmatprep.subr.mxu0 0.0
    %387 = vmatpush2.msra.mxu0 0.0
    %388 = vmatprep.subr.mxu0 0.0
    %389 = vmatpush2.msra.mxu0 0.0
    %390 = vmatprep.subr.mxu0 0.0
    %391 = vmatpush2.msra.mxu0 0.0
    %392 = vmatprep.subr.mxu0 0.0
    %393 = vmatpush2.msra.mxu0 0.0
    %394 = vmatprep.mubr.f32.mxu0 0.0
    %395 = vmatmul.mubr.f32.gmra.mxu0 %v328
    %v396 = vpop.f32.mrf.mxu0
    %v397 = vadd.f32 0.0, %v396
    %v398 = vpop.f32.mrf.mxu0
    %399 = vdwg.mxu0
    %v402 = vrot.slane %v397, 7
    %v403 = vsel %vm222, %v402, %v324
    %vm405 = vcmask 254976
    %406 = vst.msk [vmem:[#allocation7] sm:$0x3] %vm405, %v403
    // Predicated region
    $region18: #{tpu_custom_call.1} parent=1 // pred_check
      _
    $region19: #{tpu_custom_call.1} parent=1 // pred_check_branch
      %408 = sbr.rel (0) target = $region21
    $region20: #{tpu_custom_call.1} parent=1 // pred_region
      %s410 = ssub.s32 32, 32
      %411 = vsyncadd [#allocation4], %s410
      %s413 = sshll.u32 [#allocation7], 4
      %s414 = int_to_ptr.vmem [resolvable:$true] %s413
      %416 = dma.vmem_to_hbm [thread:$0]  %s414, 32, %s2, [#allocation4]
    $region21: #{tpu_custom_call.1} parent=1 // pred_fallthru
      _
    // Predicated region
    $region22: #{tpu_custom_call.1} parent=1 // pred_check
      _
    $region23: #{tpu_custom_call.1} parent=1 // pred_check_branch
      %418 = sbr.rel (0) target = $region25
    $region24: #{tpu_custom_call.1} parent=1 // pred_region
      %419 = dma.done [#allocation4], 32
    $region25: #{tpu_custom_call.1} parent=1 // pred_fallthru
      _
    %420 = vsyncpa [#allocation3], 1
    %421 = vsyncpa [#allocation6], 1
    %422 = vsyncpa [#allocation4], 1

</llo_original>
